<compile_context>
chip_gen: v5e
topology: v5e:2x2
jax: 0.10.0
libtpu: 0.0.40
codegen_flags: <defaults>
</compile_context>

<pallas_src>
import functools

import jax
import jax.numpy as jnp
import numpy as np
from jax.experimental import pallas as pl
from jax.experimental.pallas import tpu as pltpu


def _round_up(x, m):
    return ((x + m - 1) // m) * m


def _branching_q_kernel(x_ref, w1_ref, b1_ref, w2_ref, b2_ref, wq_ref, bq_ref,
                        q_ref):
    # x_ref: (TILE_B, obs) f32; weights bf16; biases f32; q_ref: (TILE_B, OUT_PAD) f32
    x = x_ref[...].astype(w1_ref.dtype)                    # in-kernel f32->bf16 (VPU, free)

    h1 = jnp.dot(x, w1_ref[...], preferred_element_type=jnp.float32) + b1_ref[...]
    h1 = jnp.maximum(h1, 0.0).astype(w2_ref.dtype)         # f32 epilogue, bf16 MXU operand

    h2 = jnp.dot(h1, w2_ref[...], preferred_element_type=jnp.float32) + b2_ref[...]
    h2 = jnp.maximum(h2, 0.0).astype(wq_ref.dtype)

    # fused value + (advantage - per-head mean) head: one lane-dense matmul
    q = jnp.dot(h2, wq_ref[...], preferred_element_type=jnp.float32) + bq_ref[...]
    q_ref[...] = q.astype(q_ref.dtype)


def _resident_spec(arr):
    """Full-array block with a constant index_map -> stays VMEM-resident."""
    nd = arr.ndim
    return pl.BlockSpec(arr.shape, lambda i, _nd=nd: (0,) * _nd)


def _pick_tile(b_pad, obs, out_pad, weight_bytes, tile_b):
    """Batch tile: >=2 grid steps for realistic batches, multiple of 16,
    and small enough that double-buffered activations + resident weights fit
    comfortably under the default scoped VMEM (32 MiB on v7x)."""
    budget = 32 * 1024 * 1024 - 2 * weight_bytes - (1 << 20)   # headroom
    per_row = 2 * obs * 4 + 2 * out_pad * 4                    # 2x-buffered f32 in + f32 out
    max_tb = max(16, (budget // max(per_row, 1)) // 16 * 16)
    tb = min(tile_b, _round_up(pl.cdiv(b_pad, 2), 16), max_tb)
    return max(tb, 16)


@functools.partial(jax.jit, static_argnames=("ac_dim", "n", "tile_b"))
def branching_q_forward(x, kparams, *, ac_dim, n, tile_b=256):
    """x: (B, obs) float32. kparams: output of prepare_kernel_params."""
    B, obs = x.shape
    hidden = kparams["w1"].shape[1]
    out_dim = ac_dim * n
    out_pad = kparams["wq"].shape[1]                       # lane-dense (multiple of 128)

    weight_bytes = sum(int(v.size) * v.dtype.itemsize for v in kparams.values())

    # Pad batch to the bf16 sublane granule (16), then to a multiple of the tile.
    b_pad = max(16, _round_up(B, 16))
    tb = _pick_tile(b_pad, obs, out_pad, weight_bytes, tile_b)
    b_pad = _round_up(b_pad, tb)
    if b_pad != B:
        x = jnp.pad(x, ((0, b_pad - B), (0, 0)))

    grid = (b_pad // tb,)

    flops = 2 * b_pad * (obs * hidden + hidden * hidden + hidden * out_pad)
    bytes_accessed = (b_pad * obs * 4 + weight_bytes + b_pad * out_pad * 4)
    cost = pl.CostEstimate(flops=flops, transcendentals=0,
                           bytes_accessed=bytes_accessed)

    q_flat = pl.pallas_call(
        _branching_q_kernel,
        out_shape=jax.ShapeDtypeStruct((b_pad, out_pad), jnp.float32),
        grid=grid,
        in_specs=[
            pl.BlockSpec((tb, obs), lambda i: (i, 0)),     # batch tile of f32 activations
            _resident_spec(kparams["w1"]), _resident_spec(kparams["b1"]),
            _resident_spec(kparams["w2"]), _resident_spec(kparams["b2"]),
            _resident_spec(kparams["wq"]), _resident_spec(kparams["bq"]),
        ],
        out_specs=pl.BlockSpec((tb, out_pad), lambda i: (i, 0)),  # lane-dense flat output
        compiler_params=pltpu.CompilerParams(
            dimension_semantics=("parallel",)),            # v7x: both TCs split the batch
        cost_estimate=cost,
    )(x, kparams["w1"], kparams["b1"], kparams["w2"], kparams["b2"],
      kparams["wq"], kparams["bq"])

    # Drop padding; torch.stack(dim=1) view restored here (free layout plumbing).
    return q_flat[:B, :out_dim].reshape(B, ac_dim, n)


def init_params(key, obs, ac_dim, n, hidden=128):
    """PyTorch-layout (transposed) f32 params mimicking nn.Linear default init."""
    ks = jax.random.split(key, 10)

    def linear(kw, kb, fan_in, fan_out):
        bound = 1.0 / np.sqrt(fan_in)
        w = jax.random.uniform(kw, (fan_in, fan_out), jnp.float32, -bound, bound)
        b = jax.random.uniform(kb, (1, fan_out), jnp.float32, -bound, bound)
        return w, b

    w1, b1 = linear(ks[0], ks[1], obs, hidden)
    w2, b2 = linear(ks[2], ks[3], hidden, hidden)
    wv, bv = linear(ks[4], ks[5], hidden, 1)
    head_ws, head_bs = [], []
    hk = jax.random.split(ks[6], 2 * ac_dim)
    for i in range(ac_dim):
        w, b = linear(hk[2 * i], hk[2 * i + 1], hidden, n)
        head_ws.append(w)
        head_bs.append(b)
    wa = jnp.concatenate(head_ws, axis=1)      # (hidden, ac_dim * n)
    ba = jnp.concatenate(head_bs, axis=1)      # (1, ac_dim * n)
    return dict(w1=w1, b1=b1, w2=w2, b2=b2, wv=wv, bv=bv, wa=wa, ba=ba)


def prepare_kernel_params(params, ac_dim, n, mxu_dtype=jnp.bfloat16):
    """Fold dueling combine (value + adv - per-head mean) into one head weight,
    zero-pad the head to a lane-dense width (multiple of 128 columns), cast
    MXU operands to bf16, keep biases f32 for the elementwise epilogue.

    NOTE: folding before the bf16 cast means the per-head zero-mean property
    holds only up to bf16 rounding; this is irrelevant for argmax action
    selection but differs in the last bits from f32 post-matmul centering."""
    hidden = params["wa"].shape[0]
    out_dim = ac_dim * n
    out_pad = max(128, _round_up(out_dim, 128))

    center = jnp.eye(n, dtype=jnp.float32) - jnp.full((n, n), 1.0 / n, jnp.float32)
    center_bd = jnp.kron(jnp.eye(ac_dim, dtype=jnp.float32), center)  # block-diag centering

    wa_c = params["wa"] @ center_bd                     # advantage minus per-head mean
    ba_c = params["ba"] @ center_bd
    wq = wa_c + params["wv"]                            # broadcast value head over all columns
    bq = ba_c + params["bv"]

    wq_p = jnp.zeros((hidden, out_pad), jnp.float32).at[:, :out_dim].set(wq)
    bq_p = jnp.zeros((1, out_pad), jnp.float32).at[:, :out_dim].set(bq)

    return dict(
        w1=params["w1"].astype(mxu_dtype), b1=params["b1"].astype(jnp.float32),
        w2=params["w2"].astype(mxu_dtype), b2=params["b2"].astype(jnp.float32),
        wq=wq_p.astype(mxu_dtype),         bq=bq_p.astype(jnp.float32),
    )


def reference_forward(x, params, ac_dim, n):
    """Pure-JAX f32 reference matching the PyTorch module semantics."""
    h = jnp.maximum(x @ params["w1"] + params["b1"], 0.0)
    h = jnp.maximum(h @ params["w2"] + params["b2"], 0.0)
    value = h @ params["wv"] + params["bv"]                        # (B, 1)
    advs = (h @ params["wa"] + params["ba"]).reshape(x.shape[0], ac_dim, n)
    return value[:, :, None] + advs - advs.mean(axis=2, keepdims=True)


# TODO(synk): update_model_mixed (Polyak target mixing) is plain parameter
# arithmetic; do it with jax.tree_util.tree_map outside the kernel.

if __name__ == "__main__":
    B, OBS, AC_DIM, N = 8, 32, 4, 8

    key = jax.random.PRNGKey(0)
    kx, kp = jax.random.split(key)
    x = jax.random.normal(kx, (B, OBS), dtype=jnp.float32)

    params = init_params(kp, OBS, AC_DIM, N)                 # PyTorch-layout f32 params
    kparams = prepare_kernel_params(params, AC_DIM, N)       # folded + padded + bf16 params

    q = branching_q_forward(x, kparams, ac_dim=AC_DIM, n=N)
    q = jax.block_until_ready(q)

    q_ref = reference_forward(x, params, AC_DIM, N)
    assert q.shape == (B, AC_DIM, N)
    # bf16 MXU operands -> compare against the f32 reference with loose tolerance.
    np.testing.assert_allclose(np.asarray(q), np.asarray(q_ref), rtol=2e-2, atol=2e-2)

    print("KERNEL_OK")
</pallas_src>

<mosaic_0001>
module attributes {stable_mosaic.version = 11 : i64} {
  func.func @_branching_q_kernel(%arg0: i32, %arg1: memref<16x32xf32, #tpu.memory_space<vmem>>, %arg2: memref<32x128xbf16, #tpu.memory_space<vmem>>, %arg3: memref<1x128xf32, #tpu.memory_space<vmem>>, %arg4: memref<128x128xbf16, #tpu.memory_space<vmem>>, %arg5: memref<1x128xf32, #tpu.memory_space<vmem>>, %arg6: memref<128x128xbf16, #tpu.memory_space<vmem>>, %arg7: memref<1x128xf32, #tpu.memory_space<vmem>>, %arg8: memref<16x128xf32, #tpu.memory_space<vmem>>) attributes {dimension_semantics = [#tpu.dimension_semantics<parallel>], iteration_bounds = array<i64: 1>, scalar_prefetch = 0 : i64, scratch_operands = 0 : i64, tpu.core_type = #tpu.core_type<tc>, window_params = [{transform_indices = @transform_0, window_bounds = array<i64: 16, 32>}, {pipeline_mode = #tpu.pipeline_mode<synchronous>, transform_indices = @transform_1, window_bounds = array<i64: 32, 128>}, {pipeline_mode = #tpu.pipeline_mode<synchronous>, transform_indices = @transform_2, window_bounds = array<i64: 1, 128>}, {pipeline_mode = #tpu.pipeline_mode<synchronous>, transform_indices = @transform_3, window_bounds = array<i64: 128, 128>}, {pipeline_mode = #tpu.pipeline_mode<synchronous>, transform_indices = @transform_4, window_bounds = array<i64: 1, 128>}, {pipeline_mode = #tpu.pipeline_mode<synchronous>, transform_indices = @transform_5, window_bounds = array<i64: 128, 128>}, {pipeline_mode = #tpu.pipeline_mode<synchronous>, transform_indices = @transform_6, window_bounds = array<i64: 1, 128>}, {transform_indices = @transform_7, window_bounds = array<i64: 16, 128>}]} {
    %c0 = arith.constant 0 : index
    %c0_0 = arith.constant 0 : index
    %0 = vector.load %arg1[%c0, %c0_0] : memref<16x32xf32, #tpu.memory_space<vmem>>, vector<16x32xf32>
    %1 = arith.truncf %0 : vector<16x32xf32> to vector<16x32xbf16>
    %c0_1 = arith.constant 0 : index
    %c0_2 = arith.constant 0 : index
    %2 = vector.load %arg2[%c0_1, %c0_2] : memref<32x128xbf16, #tpu.memory_space<vmem>>, vector<32x128xbf16>
    %cst = arith.constant dense<0.000000e+00> : vector<16x128xf32>
    %3 = tpu.matmul %1, %2, %cst {dimension_numbers = #tpu.dot_dimension_numbers<[1], [0], [0], [1], [0, 0, 1, 1], [], []>} : vector<16x32xbf16>, vector<32x128xbf16>, vector<16x128xf32> -> vector<16x128xf32>
    %c0_3 = arith.constant 0 : index
    %c0_4 = arith.constant 0 : index
    %4 = vector.load %arg3[%c0_3, %c0_4] : memref<1x128xf32, #tpu.memory_space<vmem>>, vector<1x128xf32>
    %5 = vector.broadcast %4 : vector<1x128xf32> to vector<16x128xf32>
    %6 = arith.addf %3, %5 : vector<16x128xf32>
    %cst_5 = arith.constant 0.000000e+00 : f32
    %7 = vector.broadcast %cst_5 : f32 to vector<16x128xf32>
    %8 = arith.maximumf %6, %7 : vector<16x128xf32>
    %9 = arith.truncf %8 : vector<16x128xf32> to vector<16x128xbf16>
    %c0_6 = arith.constant 0 : index
    %c0_7 = arith.constant 0 : index
    %10 = vector.load %arg4[%c0_6, %c0_7] : memref<128x128xbf16, #tpu.memory_space<vmem>>, vector<128x128xbf16>
    %cst_8 = arith.constant dense<0.000000e+00> : vector<16x128xf32>
    %11 = tpu.matmul %9, %10, %cst_8 {dimension_numbers = #tpu.dot_dimension_numbers<[1], [0], [0], [1], [0, 0, 1, 1], [], []>} : vector<16x128xbf16>, vector<128x128xbf16>, vector<16x128xf32> -> vector<16x128xf32>
    %c0_9 = arith.constant 0 : index
    %c0_10 = arith.constant 0 : index
    %12 = vector.load %arg5[%c0_9, %c0_10] : memref<1x128xf32, #tpu.memory_space<vmem>>, vector<1x128xf32>
    %13 = vector.broadcast %12 : vector<1x128xf32> to vector<16x128xf32>
    %14 = arith.addf %11, %13 : vector<16x128xf32>
    %cst_11 = arith.constant 0.000000e+00 : f32
    %15 = vector.broadcast %cst_11 : f32 to vector<16x128xf32>
    %16 = arith.maximumf %14, %15 : vector<16x128xf32>
    %17 = arith.truncf %16 : vector<16x128xf32> to vector<16x128xbf16>
    %c0_12 = arith.constant 0 : index
    %c0_13 = arith.constant 0 : index
    %18 = vector.load %arg6[%c0_12, %c0_13] : memref<128x128xbf16, #tpu.memory_space<vmem>>, vector<128x128xbf16>
    %cst_14 = arith.constant dense<0.000000e+00> : vector<16x128xf32>
    %19 = tpu.matmul %17, %18, %cst_14 {dimension_numbers = #tpu.dot_dimension_numbers<[1], [0], [0], [1], [0, 0, 1, 1], [], []>} : vector<16x128xbf16>, vector<128x128xbf16>, vector<16x128xf32> -> vector<16x128xf32>
    %c0_15 = arith.constant 0 : index
    %c0_16 = arith.constant 0 : index
    %20 = vector.load %arg7[%c0_15, %c0_16] : memref<1x128xf32, #tpu.memory_space<vmem>>, vector<1x128xf32>
    %21 = vector.broadcast %20 : vector<1x128xf32> to vector<16x128xf32>
    %22 = arith.addf %19, %21 : vector<16x128xf32>
    %c0_17 = arith.constant 0 : index
    %c0_18 = arith.constant 0 : index
    %23 = vector.load %arg8[%c0_17, %c0_18] : memref<16x128xf32, #tpu.memory_space<vmem>>, vector<16x128xf32>
    tpu.vector_store %arg8[%c0_17, %c0_18], %22 {strides = array<i32>} : memref<16x128xf32, #tpu.memory_space<vmem>>, vector<16x128xf32>,
    return
  }
  func.func @transform_0(%arg0: i32) -> (i32, i32) {
    %c0_i32 = arith.constant 0 : i32
    %c0_i32_0 = arith.constant 0 : i32
    return %arg0, %c0_i32 : i32, i32
  }
  func.func @transform_1(%arg0: i32) -> (i32, i32) {
    %c0_i32 = arith.constant 0 : i32
    %c0_i32_0 = arith.constant 0 : i32
    %c0_i32_1 = arith.constant 0 : i32
    return %c0_i32, %c0_i32_0 : i32, i32
  }
  func.func @transform_2(%arg0: i32) -> (i32, i32) {
    %c0_i32 = arith.constant 0 : i32
    %c0_i32_0 = arith.constant 0 : i32
    %c0_i32_1 = arith.constant 0 : i32
    return %c0_i32, %c0_i32_0 : i32, i32
  }
  func.func @transform_3(%arg0: i32) -> (i32, i32) {
    %c0_i32 = arith.constant 0 : i32
    %c0_i32_0 = arith.constant 0 : i32
    %c0_i32_1 = arith.constant 0 : i32
    return %c0_i32, %c0_i32_0 : i32, i32
  }
  func.func @transform_4(%arg0: i32) -> (i32, i32) {
    %c0_i32 = arith.constant 0 : i32
    %c0_i32_0 = arith.constant 0 : i32
    %c0_i32_1 = arith.constant 0 : i32
    return %c0_i32, %c0_i32_0 : i32, i32
  }
  func.func @transform_5(%arg0: i32) -> (i32, i32) {
    %c0_i32 = arith.constant 0 : i32
    %c0_i32_0 = arith.constant 0 : i32
    %c0_i32_1 = arith.constant 0 : i32
    return %c0_i32, %c0_i32_0 : i32, i32
  }
  func.func @transform_6(%arg0: i32) -> (i32, i32) {
    %c0_i32 = arith.constant 0 : i32
    %c0_i32_0 = arith.constant 0 : i32
    %c0_i32_1 = arith.constant 0 : i32
    return %c0_i32, %c0_i32_0 : i32, i32
  }
  func.func @transform_7(%arg0: i32) -> (i32, i32) {
    %c0_i32 = arith.constant 0 : i32
    %c0_i32_0 = arith.constant 0 : i32
    return %arg0, %c0_i32 : i32, i32
  }
}

</mosaic_0001>

<llo_original>
// kernel: branching_q_forward.1
$region0: #{branching_q_forward.1}
  #allocation0 [shape = 'u32[]', space=smem, size = 0x4, offset = 0x4, fixed_abs, tag = 'smem constant byte address 0x4 - core index']
  #allocation1 [shape = 'u32[72,128]{1,0:T(1,128)}', space=vmem, size = 0x9000, scoped, tag = 'internal scratch']
  %s0 = inlined_call_operand.vmem [shape: f32[16,32], index: 0, kind: input, shape index: {}]
  %s1 = inlined_call_operand.vmem [shape: bf16[32,128], index: 1, kind: input, shape index: {}]
  %s2 = inlined_call_operand.vmem [shape: f32[1,128], index: 2, kind: input, shape index: {}]
  %s3 = inlined_call_operand.hbm [shape: bf16[128,128], index: 3, kind: input, shape index: {}]
  %s4 = inlined_call_operand.vmem [shape: f32[1,128], index: 4, kind: input, shape index: {}]
  %s5 = inlined_call_operand.hbm [shape: bf16[128,128], index: 5, kind: input, shape index: {}]
  %s6 = inlined_call_operand.vmem [shape: f32[1,128], index: 6, kind: input, shape index: {}]
  %s7 = inlined_call_operand.vmem [shape: f32[16,128], index: 7, kind: output, shape index: {}]
  %s8 = sld [smem:[#allocation0]]
  $region46: #{branching_q_forward.1} parent=0
    _
  %s10 = ssub.s32 1, %s8
  %s11 = scalar_select 0, %s10, %s8
  $region1: #{branching_q_forward.1} parent=0
    #allocation2 [shape = 'u8[32768]{0}', space=vmem, size = 0x8000, scoped, tag = 'input window, operand 3, single buffered']
    #allocation3 [shape = 's32[1]{0}', space=sflag, size = 0x4, scoped, tag = 'scoped memory for branching_q_forward.1']
    #allocation4 [shape = 'u8[32768]{0}', space=vmem, size = 0x8000, scoped, tag = 'input window, operand 5, single buffered']
    #allocation5 [shape = 's32[1]{0}', space=sflag, size = 0x4, scoped, tag = 'scoped memory for branching_q_forward.1']
    %12 = vsyncpa [#allocation3], 0
    %13 = vsyncpa [#allocation5], 0
    // Predicated region
    $region2: #{branching_q_forward.1} parent=1 // pred_check
      _
    $region3: #{branching_q_forward.1} parent=1 // pred_check_branch
      %15 = sbr.rel (0) target = $region5
    $region4: #{branching_q_forward.1} parent=1 // pred_region
      _
    $region5: #{branching_q_forward.1} parent=1 // pred_fallthru
      _
    // Predicated region
    $region6: #{branching_q_forward.1} parent=1 // pred_check
      _
    $region7: #{branching_q_forward.1} parent=1 // pred_check_branch
      %17 = sbr.rel (0) target = $region9
    $region8: #{branching_q_forward.1} parent=1 // pred_region
      _
    $region9: #{branching_q_forward.1} parent=1 // pred_fallthru
      _
    // Predicated region
    $region10: #{branching_q_forward.1} parent=1 // pred_check
      _
    $region11: #{branching_q_forward.1} parent=1 // pred_check_branch
      %19 = sbr.rel (0) target = $region13
    $region12: #{branching_q_forward.1} parent=1 // pred_region
      _
    $region13: #{branching_q_forward.1} parent=1 // pred_fallthru
      _
    // Predicated region
    $region14: #{branching_q_forward.1} parent=1 // pred_check
      _
    $region15: #{branching_q_forward.1} parent=1 // pred_check_branch
      %21 = sbr.rel (0) target = $region17
    $region16: #{branching_q_forward.1} parent=1 // pred_region
      %23 = vsyncadd [#allocation3], 0
      %s24 = sshll.u32 %s3, 4
      %s25 = int_to_ptr.hbm [resolvable:$true] %s24
      %s26 = sshll.u32 [#allocation2], 4
      %s27 = int_to_ptr.vmem [resolvable:$true] %s26
      %32 = dma.hbm_to_vmem [thread:$0]  %s25, 1024, %s27, [#allocation3], 64, 64, 4
    $region17: #{branching_q_forward.1} parent=1 // pred_fallthru
      _
    // Predicated region
    $region18: #{branching_q_forward.1} parent=1 // pred_check
      _
    $region19: #{branching_q_forward.1} parent=1 // pred_check_branch
      %34 = sbr.rel (0) target = $region21
    $region20: #{branching_q_forward.1} parent=1 // pred_region
      _
    $region21: #{branching_q_forward.1} parent=1 // pred_fallthru
      _
    // Predicated region
    $region22: #{branching_q_forward.1} parent=1 // pred_check
      _
    $region23: #{branching_q_forward.1} parent=1 // pred_check_branch
      %36 = sbr.rel (0) target = $region25
    $region24: #{branching_q_forward.1} parent=1 // pred_region
      %38 = vsyncadd [#allocation5], 0
      %s39 = sshll.u32 %s5, 4
      %s40 = int_to_ptr.hbm [resolvable:$true] %s39
      %s41 = sshll.u32 [#allocation4], 4
      %s42 = int_to_ptr.vmem [resolvable:$true] %s41
      %47 = dma.hbm_to_vmem [thread:$0]  %s40, 1024, %s42, [#allocation5], 64, 64, 4
    $region25: #{branching_q_forward.1} parent=1 // pred_fallthru
      _
    // Predicated region
    $region26: #{branching_q_forward.1} parent=1 // pred_check
      _
    $region27: #{branching_q_forward.1} parent=1 // pred_check_branch
      %49 = sbr.rel (0) target = $region29
    $region28: #{branching_q_forward.1} parent=1 // pred_region
      _
    $region29: #{branching_q_forward.1} parent=1 // pred_fallthru
      _
    // Predicated region
    $region30: #{branching_q_forward.1} parent=1 // pred_check
      _
    $region31: #{branching_q_forward.1} parent=1 // pred_check_branch
      %51 = sbr.rel (0) target = $region33
    $region32: #{branching_q_forward.1} parent=1 // pred_region
      %53 = dma.done [#allocation3], 1024
    $region33: #{branching_q_forward.1} parent=1 // pred_fallthru
      _
    // Predicated region
    $region34: #{branching_q_forward.1} parent=1 // pred_check
      _
    $region35: #{branching_q_forward.1} parent=1 // pred_check_branch
      %55 = sbr.rel (0) target = $region37
    $region36: #{branching_q_forward.1} parent=1 // pred_region
      %57 = dma.done [#allocation5], 1024
    $region37: #{branching_q_forward.1} parent=1 // pred_fallthru
      _
    %v59 = vld [vmem:[%s0] sm:$0xff]
    %v60 = vld [vmem:[%s0 + $0x8] sm:$0xff]
    %v61 = vpack.c.bf16 %v60, %v59
    %v62 = vld [vmem:[%s1] sm:$0xf]
    %v63 = vld [vmem:[%s1 + $0x4] sm:$0xf]
    %v64 = vld [vmem:[%s1 + $0x8] sm:$0xf]
    %v65 = vld [vmem:[%s1 + $0xc] sm:$0xf]
    %v66 = vld [vmem:[%s2] sm:$0x1]
    %v68 = vperm.slane %v66, 0
    %v74 = vunpack.c.l.b16 %v62
    %v75 = vunpack.c.l.b16 %v63
    %v76 = vunpack.c.l.b16 %v64
    %v77 = vunpack.c.l.b16 %v65
    %v78 = vpack.c.b16 %v75, %v74
    %v79 = vpack.c.b16 %v77, %v76
    %vm82 = vcmask 261120
    %v84 = vsel %vm82, %v61, 0
    %86 = vmatpush.bf16.msra.mxu0 0
    %87 = vmatpush.bf16.msra.mxu0 0
    %88 = vmatpush.bf16.msra.mxu0 0
    %89 = vmatpush.bf16.msra.mxu0 0
    %90 = vmatpush.bf16.msra.mxu0 0
    %91 = vmatpush.bf16.msra.mxu0 0
    %92 = vmatpush.bf16.msra.mxu0 %v79
    %93 = vmatpush.bf16.msra.mxu0 %v78
    %94 = vmatmul.bf16.gmra.mxu0 %v84
    %v95 = vpop.f32.mrf.mxu0
    %v96 = vadd.f32 %v68, %v95
    %v97 = vpop.f32.mrf.mxu0
    %v98 = vadd.f32 %v68, %v97
    %99 = vdwg.mxu0
    %v100 = vmax.f32 %v96, 0.0
    %v101 = vmax.f32 %v98, 0.0
    %v102 = vpack.c.bf16 %v101, %v100
    %v103 = vld [vmem:[#allocation2] sm:$0xf]
    %v104 = vld [vmem:[#allocation2 + $0x4] sm:$0xf]
    %v105 = vld [vmem:[#allocation2 + $0x8] sm:$0xf]
    %v106 = vld [vmem:[#allocation2 + $0xc] sm:$0xf]
    %v107 = vld [vmem:[#allocation2 + $0x10] sm:$0xf]
    %v108 = vld [vmem:[#allocation2 + $0x14] sm:$0xf]
    %v109 = vld [vmem:[#allocation2 + $0x18] sm:$0xf]
    %v110 = vld [vmem:[#allocation2 + $0x1c] sm:$0xf]
    %v111 = vld [vmem:[#allocation2 + $0x20] sm:$0xf]
    %v112 = vld [vmem:[#allocation2 + $0x24] sm:$0xf]
    %v113 = vld [vmem:[#allocation2 + $0x28] sm:$0xf]
    %v114 = vld [vmem:[#allocation2 + $0x2c] sm:$0xf]
    %v115 = vld [vmem:[#allocation2 + $0x30] sm:$0xf]
    %v116 = vld [vmem:[#allocation2 + $0x34] sm:$0xf]
    %v117 = vld [vmem:[#allocation2 + $0x38] sm:$0xf]
    %v118 = vld [vmem:[#allocation2 + $0x3c] sm:$0xf]
    %v119 = vld [vmem:[%s4] sm:$0x1]
    %v121 = vperm.slane %v119, 0
    %v139 = vunpack.c.l.b16 %v103
    %v140 = vunpack.c.l.b16 %v104
    %v141 = vunpack.c.l.b16 %v105
    %v142 = vunpack.c.l.b16 %v106
    %v143 = vunpack.c.l.b16 %v107
    %v144 = vunpack.c.l.b16 %v108
    %v145 = vunpack.c.l.b16 %v109
    %v146 = vunpack.c.l.b16 %v110
    %v147 = vunpack.c.l.b16 %v111
    %v148 = vunpack.c.l.b16 %v112
    %v149 = vunpack.c.l.b16 %v113
    %v150 = vunpack.c.l.b16 %v114
    %v151 = vunpack.c.l.b16 %v115
    %v152 = vunpack.c.l.b16 %v116
    %v153 = vunpack.c.l.b16 %v117
    %v154 = vunpack.c.l.b16 %v118
    %v155 = vpack.c.b16 %v140, %v139
    %v156 = vpack.c.b16 %v142, %v141
    %v157 = vpack.c.b16 %v144, %v143
    %v158 = vpack.c.b16 %v146, %v145
    %v159 = vpack.c.b16 %v148, %v147
    %v160 = vpack.c.b16 %v150, %v149
    %v161 = vpack.c.b16 %v152, %v151
    %v162 = vpack.c.b16 %v154, %v153
    %171 = vmatpush.bf16.msra.mxu0 %v162
    %172 = vmatpush.bf16.msra.mxu0 %v161
    %173 = vmatpush.bf16.msra.mxu0 %v160
    %174 = vmatpush.bf16.msra.mxu0 %v159
    %175 = vmatpush.bf16.msra.mxu0 %v158
    %176 = vmatpush.bf16.msra.mxu0 %v157
    %177 = vmatpush.bf16.msra.mxu0 %v156
    %178 = vmatpush.bf16.msra.mxu0 %v155
    %179 = vmatmul.bf16.gmra.mxu0 %v102
    %v180 = vpop.f32.mrf.mxu0
    %v181 = vadd.f32 %v121, %v180
    %v182 = vpop.f32.mrf.mxu0
    %v183 = vadd.f32 %v121, %v182
    %184 = vdwg.mxu0
    %v185 = vmax.f32 %v181, 0.0
    %v186 = vmax.f32 %v183, 0.0
    %v187 = vpack.c.bf16 %v186, %v185
    %v188 = vld [vmem:[#allocation4] sm:$0xf]
    %v189 = vld [vmem:[#allocation4 + $0x4] sm:$0xf]
    %v190 = vld [vmem:[#allocation4 + $0x8] sm:$0xf]
    %v191 = vld [vmem:[#allocation4 + $0xc] sm:$0xf]
    %v192 = vld [vmem:[#allocation4 + $0x10] sm:$0xf]
    %v193 = vld [vmem:[#allocation4 + $0x14] sm:$0xf]
    %v194 = vld [vmem:[#allocation4 + $0x18] sm:$0xf]
    %v195 = vld [vmem:[#allocation4 + $0x1c] sm:$0xf]
    %v196 = vld [vmem:[#allocation4 + $0x20] sm:$0xf]
    %v197 = vld [vmem:[#allocation4 + $0x24] sm:$0xf]
    %v198 = vld [vmem:[#allocation4 + $0x28] sm:$0xf]
    %v199 = vld [vmem:[#allocation4 + $0x2c] sm:$0xf]
    %v200 = vld [vmem:[#allocation4 + $0x30] sm:$0xf]
    %v201 = vld [vmem:[#allocation4 + $0x34] sm:$0xf]
    %v202 = vld [vmem:[#allocation4 + $0x38] sm:$0xf]
    %v203 = vld [vmem:[#allocation4 + $0x3c] sm:$0xf]
    %v204 = vld [vmem:[%s6] sm:$0x1]
    %v206 = vperm.slane %v204, 0
    %v224 = vunpack.c.l.b16 %v188
    %v225 = vunpack.c.l.b16 %v189
    %v226 = vunpack.c.l.b16 %v190
    %v227 = vunpack.c.l.b16 %v191
    %v228 = vunpack.c.l.b16 %v192
    %v229 = vunpack.c.l.b16 %v193
    %v230 = vunpack.c.l.b16 %v194
    %v231 = vunpack.c.l.b16 %v195
    %v232 = vunpack.c.l.b16 %v196
    %v233 = vunpack.c.l.b16 %v197
    %v234 = vunpack.c.l.b16 %v198
    %v235 = vunpack.c.l.b16 %v199
    %v236 = vunpack.c.l.b16 %v200
    %v237 = vunpack.c.l.b16 %v201
    %v238 = vunpack.c.l.b16 %v202
    %v239 = vunpack.c.l.b16 %v203
    %v240 = vpack.c.b16 %v225, %v224
    %v241 = vpack.c.b16 %v227, %v226
    %v242 = vpack.c.b16 %v229, %v228
    %v243 = vpack.c.b16 %v231, %v230
    %v244 = vpack.c.b16 %v233, %v232
    %v245 = vpack.c.b16 %v235, %v234
    %v246 = vpack.c.b16 %v237, %v236
    %v247 = vpack.c.b16 %v239, %v238
    %256 = vmatpush.bf16.msra.mxu0 %v247
    %257 = vmatpush.bf16.msra.mxu0 %v246
    %258 = vmatpush.bf16.msra.mxu0 %v245
    %259 = vmatpush.bf16.msra.mxu0 %v244
    %260 = vmatpush.bf16.msra.mxu0 %v243
    %261 = vmatpush.bf16.msra.mxu0 %v242
    %262 = vmatpush.bf16.msra.mxu0 %v241
    %263 = vmatpush.bf16.msra.mxu0 %v240
    %264 = vmatmul.bf16.gmra.mxu0 %v187
    %v265 = vpop.f32.mrf.mxu0
    %v266 = vadd.f32 %v206, %v265
    %v267 = vpop.f32.mrf.mxu0
    %v268 = vadd.f32 %v206, %v267
    %269 = vdwg.mxu0
    %270 = vst [vmem:[%s7] sm:$0xff] %v266
    %271 = vst [vmem:[%s7 + $0x8] sm:$0xff] %v268
    // Predicated region
    $region38: #{branching_q_forward.1} parent=1 // pred_check
      _
    $region39: #{branching_q_forward.1} parent=1 // pred_check_branch
      %273 = sbr.rel (0) target = $region41
    $region40: #{branching_q_forward.1} parent=1 // pred_region
      _
    $region41: #{branching_q_forward.1} parent=1 // pred_fallthru
      _
    // Predicated region
    $region42: #{branching_q_forward.1} parent=1 // pred_check
      _
    $region43: #{branching_q_forward.1} parent=1 // pred_check_branch
      %275 = sbr.rel (0) target = $region45
    $region44: #{branching_q_forward.1} parent=1 // pred_region
      _
    $region45: #{branching_q_forward.1} parent=1 // pred_fallthru
      _
    %276 = vsyncpa [#allocation3], 1
    %277 = vsyncpa [#allocation5], 1

</llo_original>
